<compile_context>
chip_gen: v6e
topology: v6e:2x2x1
jax: 0.10.0
libtpu: 0.0.40
codegen_flags: <defaults>
</compile_context>

<pallas_src>
import functools

import jax
import jax.numpy as jnp
from jax import lax
from jax.experimental import pallas as pl
from jax.experimental.pallas import tpu as pltpu

LEAKY_SLOPE = 0.2
BN_EPS = 1e-5
LANE = 128


def _round_up(x, m):
    return ((x + m - 1) // m) * m


def _vmem_budget():
    """(physical VMEM capacity, usable budget) in bytes.

    v5e/v6e: 128 MiB -> 96 MiB budget.  v7x: 64 MiB -> 48 MiB budget
    (leaves pipelining / compiler headroom, per perf review)."""
    try:
        cap = int(pltpu.get_tpu_info().vmem_capacity_bytes)
    except Exception:
        cap = 64 << 20                      # assume the smallest (v7x)
    budget = max(32 << 20, min(cap * 3 // 4, cap - (8 << 20)))
    return cap, budget


# --------------------------------------------------------------------------- #
# Kernel 1: conv-as-matmul (+ bias) with compact per-tile partial BN stats.
# Grid (j: C_out tiles, i: M tiles), both 'parallel'.  Used for the two-pass
# BN path and for norm=False.
# --------------------------------------------------------------------------- #
def _conv_stats_kernel(p_ref, w_ref, b_ref, y_ref, s_ref, *, m_total, tm):
    i = pl.program_id(1)
    b = b_ref[...]                                               # (1, tn) f32
    y = jnp.dot(p_ref[...], w_ref[...],
                preferred_element_type=jnp.float32) + b          # (tm, tn) f32
    y_ref[...] = y

    # Rows that are zero-padding of M hold exactly `b`; mask them out of stats.
    row = i * tm + lax.broadcasted_iota(jnp.int32, (tm, 1), 0)
    valid = (row < m_total).astype(jnp.float32)
    # Bias-shifted accumulation: avoids E[y^2]-E[y]^2 cancellation when the
    # bias dominates the activation std (variance is shift-invariant).
    z = (y - b) * valid
    s_ref[0] = jnp.concatenate(
        [jnp.sum(z, axis=0, keepdims=True),
         jnp.sum(z * z, axis=0, keepdims=True)], axis=0)          # (2, tn)


# --------------------------------------------------------------------------- #
# Kernel 2: fully fused conv + bias + BatchNorm.
# Grid (j 'parallel', i 'arbitrary').  The (M_pad, tn) output column stays
# resident in VMEM across the i axis; bias-shifted sum/sumsq accumulate in
# scratch; a pl.when(last) finalize normalizes the resident column in place.
# --------------------------------------------------------------------------- #
def _conv_bn_fused_kernel(p_ref, w_ref, b_ref, g_ref, bt_ref, o_ref,
                          sum_ref, sq_ref, *, m_total, tm, num_i):
    i = pl.program_id(1)
    b = b_ref[...]
    y = jnp.dot(p_ref[...], w_ref[...],
                preferred_element_type=jnp.float32) + b
    r0 = pl.multiple_of(i * tm, tm)
    o_ref[pl.ds(r0, tm), :] = y                 # resident for the whole i loop

    row = i * tm + lax.broadcasted_iota(jnp.int32, (tm, 1), 0)
    valid = (row < m_total).astype(jnp.float32)
    z = (y - b) * valid

    @pl.when(i == 0)
    def _init():
        sum_ref[...] = jnp.zeros_like(sum_ref)
        sq_ref[...] = jnp.zeros_like(sq_ref)

    sum_ref[...] += jnp.sum(z, axis=0, keepdims=True)
    sq_ref[...] += jnp.sum(z * z, axis=0, keepdims=True)

    @pl.when(i == num_i - 1)
    def _finalize():
        inv_m = 1.0 / float(m_total)
        mean_z = sum_ref[...] * inv_m                             # E[y] - b
        var = jnp.maximum(sq_ref[...] * inv_m - mean_z * mean_z, 0.0)  # biased
        inv = lax.rsqrt(var + BN_EPS)
        scale = g_ref[...] * inv
        shift = bt_ref[...] - (mean_z + b) * scale

        # Pure VPU+vst sweep over VMEM-resident data; unroll for LLO visibility.
        def body(t, carry):
            r = pl.multiple_of(t * tm, tm)
            o_ref[pl.ds(r, tm), :] = o_ref[pl.ds(r, tm), :] * scale + shift
            return carry

        lax.fori_loop(0, num_i, body, 0, unroll=(num_i <= 16))


# --------------------------------------------------------------------------- #
# Kernel 3: tiled BN apply for the two-pass path (normalized in place via
# input/output aliasing).  Grid (j, i), both 'parallel'.
# --------------------------------------------------------------------------- #
def _bn_apply_kernel(y_ref, sc_ref, sh_ref, o_ref):
    o_ref[...] = y_ref[...] * sc_ref[...] + sh_ref[...]


def encoder_block_forward(x, w, b, gamma, beta, *, stride=2, padding=1, norm=True,
                          tm=512, tn=256, compute_dtype=jnp.bfloat16,
                          force_two_pass=False):
    """x: (N, C_in, H, W) f32; w: (C_out, C_in, KH, KW); b/gamma/beta: (C_out,)."""
    N, C_in, H, W = x.shape
    C_out, _, KH, KW = w.shape
    H_out = (H + 2 * padding - KH) // stride + 1
    W_out = (W + 2 * padding - KW) // stride + 1
    M = N * H_out * W_out
    K = C_in * KH * KW

    itemsize = jnp.dtype(compute_dtype).itemsize
    sub = 16 if itemsize == 2 else 8           # bf16 sublane packing needs 16 rows

    C_out_p = _round_up(C_out, LANE)
    K_p = _round_up(K, LANE)
    tn = min(_round_up(tn, LANE), C_out_p)
    num_j = C_out_p // tn

    vmem_cap, budget = _vmem_budget()

    # Auto-derive the M tile: biggest that fits the budget next to the
    # double-buffered operand tiles (v7x only has 64 MiB per TensorCore).
    fixed = 2 * itemsize * K_p * tn + 16 * 4 * tn + (4 << 20)
    per_row = 2 * itemsize * K_p + 2 * 4 * tn
    tm_cap = max(sub, (budget - fixed) // per_row)
    tm = max(sub, (min(tm, tm_cap, _round_up(M, sub)) // sub) * sub)
    M_pad = _round_up(M, tm)
    num_i = M_pad // tm

    # ---- wrapper glue: LeakyReLU once on x, zero-pad, im2col gather ----
    # TODO(synk): replace with an in-kernel tap gather from a non-duplicated
    # NHWC / space-to-depth x (memory_space=pl.ANY + manual DMA).
    x_act = jnp.where(x > 0, x, LEAKY_SLOPE * x).astype(jnp.float32)
    x_pad = jnp.pad(x_act, ((0, 0), (0, 0), (padding, padding), (padding, padding)))
    cols = []
    for kh in range(KH):
        for kw in range(KW):
            cols.append(x_pad[:, :, kh: kh + stride * H_out: stride,
                                    kw: kw + stride * W_out: stride])
    # K flattened in (ci, kh, kw) order, matching PyTorch's weight.reshape(C_out, -1).
    patches = jnp.stack(cols, axis=2).reshape(N, K, H_out, W_out)
    patches = jnp.transpose(patches, (0, 2, 3, 1)).reshape(M, K)
    patches = jnp.pad(patches, ((0, M_pad - M), (0, K_p - K))).astype(compute_dtype)

    w2 = w.reshape(C_out, K).T.astype(jnp.float32)                   # (K, C_out)
    w2 = jnp.pad(w2, ((0, K_p - K), (0, C_out_p - C_out))).astype(compute_dtype)
    pad_c = ((0, 0), (0, C_out_p - C_out))
    b2 = jnp.pad(b.reshape(1, C_out).astype(jnp.float32), pad_c)
    g2 = jnp.pad(gamma.reshape(1, C_out).astype(jnp.float32), pad_c)
    bt2 = jnp.pad(beta.reshape(1, C_out).astype(jnp.float32), pad_c)

    p_spec = pl.BlockSpec((tm, K_p), lambda j, i: (i, 0))
    w_spec = pl.BlockSpec((K_p, tn), lambda j, i: (0, j))
    vec_spec = pl.BlockSpec((1, tn), lambda j, i: (0, j))
    y_spec = pl.BlockSpec((tm, tn), lambda j, i: (i, j))

    # Fuse decision: resident output column + double-buffered operand tiles
    # must fit the budget; on v7x prefer the fully-'parallel' two-pass path
    # once there is enough tiling to occupy both TensorCores.
    fused_bytes = (4 * M_pad * tn + 2 * itemsize * tm * K_p
                   + 2 * itemsize * K_p * tn + 16 * 4 * tn + (4 << 20))
    prefer_two_pass = force_two_pass or (vmem_cap <= (64 << 20)
                                         and num_i * num_j >= 4)
    fuse_bn = norm and (not prefer_two_pass) and (fused_bytes <= budget)
    vmem_limit = int(budget)

    if fuse_bn:
        y = pl.pallas_call(
            functools.partial(_conv_bn_fused_kernel, m_total=M, tm=tm, num_i=num_i),
            out_shape=jax.ShapeDtypeStruct((M_pad, C_out_p), jnp.float32),
            grid_spec=pltpu.PrefetchScalarGridSpec(
                num_scalar_prefetch=0,
                grid=(num_j, num_i),
                in_specs=[p_spec, w_spec, vec_spec, vec_spec, vec_spec],
                out_specs=pl.BlockSpec((M_pad, tn), lambda j, i: (0, j)),
                scratch_shapes=[pltpu.VMEM((1, tn), jnp.float32),
                                pltpu.VMEM((1, tn), jnp.float32)]),
            compiler_params=pltpu.CompilerParams(
                dimension_semantics=("parallel", "arbitrary"),
                vmem_limit_bytes=vmem_limit),
        )(patches, w2, b2, g2, bt2)
    else:
        y, stats = pl.pallas_call(
            functools.partial(_conv_stats_kernel, m_total=M, tm=tm),
            out_shape=(jax.ShapeDtypeStruct((M_pad, C_out_p), jnp.float32),
                       jax.ShapeDtypeStruct((num_i, 2, C_out_p), jnp.float32)),
            grid_spec=pltpu.PrefetchScalarGridSpec(
                num_scalar_prefetch=0,
                grid=(num_j, num_i),
                in_specs=[p_spec, w_spec, vec_spec],
                out_specs=[y_spec,
                           pl.BlockSpec((1, 2, tn), lambda j, i: (i, 0, j))]),
            compiler_params=pltpu.CompilerParams(
                dimension_semantics=("parallel", "parallel"),
                vmem_limit_bytes=vmem_limit),
        )(patches, w2, b2)

        if norm:
            # Tiny host-side combine of the per-tile partials (bias-shifted).
            s1 = jnp.sum(stats[:, 0, :], axis=0)
            s2 = jnp.sum(stats[:, 1, :], axis=0)
            mean_z = s1 / M
            var = jnp.maximum(s2 / M - mean_z * mean_z, 0.0)
            inv = lax.rsqrt(var + BN_EPS)
            scale = (g2[0] * inv).reshape(1, C_out_p)
            shift = (bt2[0] - (mean_z + b2[0]) * (g2[0] * inv)).reshape(1, C_out_p)

            y = pl.pallas_call(
                _bn_apply_kernel,
                out_shape=jax.ShapeDtypeStruct((M_pad, C_out_p), jnp.float32),
                grid_spec=pltpu.PrefetchScalarGridSpec(
                    num_scalar_prefetch=0,
                    grid=(num_j, num_i),
                    in_specs=[y_spec, vec_spec, vec_spec],
                    out_specs=y_spec),
                input_output_aliases={0: 0},              # normalize y in place
                compiler_params=pltpu.CompilerParams(
                    dimension_semantics=("parallel", "parallel"),
                    vmem_limit_bytes=vmem_limit),
            )(y, scale, shift)

    # TODO(synk): emit NHWC directly (skip this transpose) when the next
    # block's patch gather can consume channels-last.
    out = y[:M, :C_out].reshape(N, H_out, W_out, C_out)
    return jnp.transpose(out, (0, 3, 1, 2))               # back to NCHW


def _reference(x, w, b, gamma, beta, *, norm=True):
    fx = jnp.where(x > 0, x, LEAKY_SLOPE * x)
    y = lax.conv_general_dilated(
        fx, w, window_strides=(2, 2), padding=((1, 1), (1, 1)),
        dimension_numbers=("NCHW", "OIHW", "NCHW"),
    ) + b[None, :, None, None]
    if not norm:
        return y
    mean = jnp.mean(y, axis=(0, 2, 3), keepdims=True)
    var = jnp.mean((y - mean) ** 2, axis=(0, 2, 3), keepdims=True)
    return (y - mean) / jnp.sqrt(var + BN_EPS) * gamma[None, :, None, None] \
        + beta[None, :, None, None]


if __name__ == "__main__":
    key = jax.random.PRNGKey(0)
    ks = jax.random.split(key, 5)

    def check(name, shapes, tol, **kw):
        N, C_in, H, W, C_out = shapes
        x = jax.random.normal(ks[0], (N, C_in, H, W), dtype=jnp.float32)
        w = 0.1 * jax.random.normal(ks[1], (C_out, C_in, 4, 4), dtype=jnp.float32)
        b = 0.5 * jax.random.normal(ks[2], (C_out,), dtype=jnp.float32)
        gamma = 1.0 + 0.1 * jax.random.normal(ks[3], (C_out,), dtype=jnp.float32)
        beta = 0.1 * jax.random.normal(ks[4], (C_out,), dtype=jnp.float32)
        ref = _reference(x, w, b, gamma, beta, norm=kw.get("norm", True))
        fn = jax.jit(functools.partial(encoder_block_forward, **kw))
        out = jax.block_until_ready(fn(x, w, b, gamma, beta))
        assert out.shape == ref.shape, (name, out.shape, ref.shape)
        err = float(jnp.max(jnp.abs(out - ref)))
        assert jnp.allclose(out, ref, atol=tol, rtol=tol), (name, err)

    small = (2, 4, 16, 16, 8)
    wide = (2, 8, 16, 16, 160)      # C_out_p = 256 -> exercises C_out (j) tiling

    # 1) default: bf16 MXU operands, auto path (fused single-pass BN here)
    check("bf16_default", small, 5e-2)
    # 2) f32 operands, fused BN (tight correctness)
    check("f32_fused", small, 2e-3, compute_dtype=jnp.float32)
    # 3) f32, forced two-pass BN (partial stats + aliased in-place normalize)
    check("f32_two_pass", small, 2e-3, compute_dtype=jnp.float32,
          force_two_pass=True)
    # 4) ragged M tiling (tm does not divide M; padded rows masked out of stats)
    check("bf16_ragged_tm", small, 5e-2, tm=48)
    # 5) output-channel tiling (num_j=2), fused path
    check("f32_couttile_fused", wide, 2e-3, compute_dtype=jnp.float32, tn=128)
    # 6) output-channel tiling, two-pass path
    check("f32_couttile_2pass", wide, 2e-3, compute_dtype=jnp.float32, tn=128,
          force_two_pass=True)
    # 7) norm=False (plain LeakyReLU -> Conv2d)
    check("f32_no_norm", small, 2e-3, compute_dtype=jnp.float32, norm=False)

    print("KERNEL_OK")
</pallas_src>

<mosaic_0001>
module attributes {stable_mosaic.version = 11 : i64} {
  func.func @_conv_bn_fused_kernel(%arg0: i32, %arg1: i32, %arg2: memref<128x128xbf16, #tpu.memory_space<vmem>>, %arg3: memref<128x128xbf16, #tpu.memory_space<vmem>>, %arg4: memref<1x128xf32, #tpu.memory_space<vmem>>, %arg5: memref<1x128xf32, #tpu.memory_space<vmem>>, %arg6: memref<1x128xf32, #tpu.memory_space<vmem>>, %arg7: memref<128x128xf32, #tpu.memory_space<vmem>>, %arg8: memref<1x128xf32, #tpu.memory_space<vmem>>, %arg9: memref<1x128xf32, #tpu.memory_space<vmem>>) attributes {dimension_semantics = [#tpu.dimension_semantics<parallel>, #tpu.dimension_semantics<arbitrary>], iteration_bounds = array<i64: 1, 1>, scalar_prefetch = 0 : i64, scratch_operands = 2 : i64, tpu.core_type = #tpu.core_type<tc>, window_params = [{transform_indices = @transform_0, window_bounds = array<i64: 128, 128>}, {transform_indices = @transform_1, window_bounds = array<i64: 128, 128>}, {transform_indices = @transform_2, window_bounds = array<i64: 1, 128>}, {transform_indices = @transform_3, window_bounds = array<i64: 1, 128>}, {transform_indices = @transform_4, window_bounds = array<i64: 1, 128>}, {transform_indices = @transform_5, window_bounds = array<i64: 128, 128>}]} {
    %c0 = arith.constant 0 : index
    %c0_0 = arith.constant 0 : index
    %0 = vector.load %arg4[%c0, %c0_0] : memref<1x128xf32, #tpu.memory_space<vmem>>, vector<1x128xf32>
    %c0_1 = arith.constant 0 : index
    %c0_2 = arith.constant 0 : index
    %1 = vector.load %arg2[%c0_1, %c0_2] : memref<128x128xbf16, #tpu.memory_space<vmem>>, vector<128x128xbf16>
    %c0_3 = arith.constant 0 : index
    %c0_4 = arith.constant 0 : index
    %2 = vector.load %arg3[%c0_3, %c0_4] : memref<128x128xbf16, #tpu.memory_space<vmem>>, vector<128x128xbf16>
    %cst = arith.constant dense<0.000000e+00> : vector<128x128xf32>
    %3 = tpu.matmul %1, %2, %cst {dimension_numbers = #tpu.dot_dimension_numbers<[1], [0], [0], [1], [0, 0, 1, 1], [], []>} : vector<128x128xbf16>, vector<128x128xbf16>, vector<128x128xf32> -> vector<128x128xf32>
    %4 = vector.broadcast %0 : vector<1x128xf32> to vector<128x128xf32>
    %5 = arith.addf %3, %4 : vector<128x128xf32>
    %c128_i32 = arith.constant 128 : i32
    %6 = arith.muli %arg1, %c128_i32 : i32
    %7 = tpu.assume_multiple %6, 128 : i32
    %8 = arith.index_cast %7 : i32 to index
    %c0_5 = arith.constant 0 : index
    %9 = vector.load %arg7[%8, %c0_5] : memref<128x128xf32, #tpu.memory_space<vmem>>, vector<128x128xf32>
    tpu.vector_store %arg7[%8, %c0_5], %5 {strides = array<i32>} : memref<128x128xf32, #tpu.memory_space<vmem>>, vector<128x128xf32>,
    %c128_i32_6 = arith.constant 128 : i32
    %10 = arith.muli %arg1, %c128_i32_6 : i32
    %11 = tpu.iota {dimensions = array<i32: 0>} : vector<128x1xi32>
    %12 = vector.broadcast %10 : i32 to vector<128x1xi32>
    %13 = arith.addi %12, %11 : vector<128x1xi32>
    %c128_i32_7 = arith.constant 128 : i32
    %14 = vector.broadcast %c128_i32_7 : i32 to vector<128x1xi32>
    %15 = arith.cmpi slt, %13, %14 : vector<128x1xi32>
    %16 = arith.extui %15 : vector<128x1xi1> to vector<128x1xi32>
    %17 = arith.sitofp %16 : vector<128x1xi32> to vector<128x1xf32>
    %18 = vector.broadcast %0 : vector<1x128xf32> to vector<128x128xf32>
    %19 = arith.subf %5, %18 : vector<128x128xf32>
    %20 = vector.broadcast %17 : vector<128x1xf32> to vector<128x128xf32>
    %21 = arith.mulf %19, %20 : vector<128x128xf32>
    %c0_i32 = arith.constant 0 : i32
    %22 = arith.cmpi eq, %arg1, %c0_i32 : i32
    %23 = arith.extui %22 : i1 to i32
    %c0_i32_8 = arith.constant 0 : i32
    %24 = arith.cmpi ne, %23, %c0_i32_8 : i32
    scf.if %24 {
      %cst_21 = arith.constant 0.000000e+00 : f32
      %39 = vector.broadcast %cst_21 : f32 to vector<1x128xf32>
      %c0_22 = arith.constant 0 : index
      %c0_23 = arith.constant 0 : index
      %40 = vector.load %arg8[%c0_22, %c0_23] : memref<1x128xf32, #tpu.memory_space<vmem>>, vector<1x128xf32>
      tpu.vector_store %arg8[%c0_22, %c0_23], %39 {strides = array<i32>} : memref<1x128xf32, #tpu.memory_space<vmem>>, vector<1x128xf32>,
      %cst_24 = arith.constant 0.000000e+00 : f32
      %41 = vector.broadcast %cst_24 : f32 to vector<1x128xf32>
      %c0_25 = arith.constant 0 : index
      %c0_26 = arith.constant 0 : index
      %42 = vector.load %arg9[%c0_25, %c0_26] : memref<1x128xf32, #tpu.memory_space<vmem>>, vector<1x128xf32>
      tpu.vector_store %arg9[%c0_25, %c0_26], %41 {strides = array<i32>} : memref<1x128xf32, #tpu.memory_space<vmem>>, vector<1x128xf32>,
    } else {
    }
    %c0_9 = arith.constant 0 : index
    %c0_10 = arith.constant 0 : index
    %25 = vector.load %arg8[%c0_9, %c0_10] : memref<1x128xf32, #tpu.memory_space<vmem>>, vector<1x128xf32>
    %cst_11 = arith.constant dense<0.000000e+00> : vector<128xf32>
    %26 = vector.multi_reduction <add>, %21, %cst_11 [0] : vector<128x128xf32> to vector<128xf32>
    %27 = vector.shape_cast %26 : vector<128xf32> to vector<1x128xf32>
    %28 = arith.addf %25, %27 : vector<1x128xf32>
    %c0_12 = arith.constant 0 : index
    %c0_13 = arith.constant 0 : index
    %29 = vector.load %arg8[%c0_12, %c0_13] : memref<1x128xf32, #tpu.memory_space<vmem>>, vector<1x128xf32>
    tpu.vector_store %arg8[%c0_12, %c0_13], %28 {strides = array<i32>} : memref<1x128xf32, #tpu.memory_space<vmem>>, vector<1x128xf32>,
    %c0_14 = arith.constant 0 : index
    %c0_15 = arith.constant 0 : index
    %30 = vector.load %arg9[%c0_14, %c0_15] : memref<1x128xf32, #tpu.memory_space<vmem>>, vector<1x128xf32>
    %31 = arith.mulf %21, %21 : vector<128x128xf32>
    %cst_16 = arith.constant dense<0.000000e+00> : vector<128xf32>
    %32 = vector.multi_reduction <add>, %31, %cst_16 [0] : vector<128x128xf32> to vector<128xf32>
    %33 = vector.shape_cast %32 : vector<128xf32> to vector<1x128xf32>
    %34 = arith.addf %30, %33 : vector<1x128xf32>
    %c0_17 = arith.constant 0 : index
    %c0_18 = arith.constant 0 : index
    %35 = vector.load %arg9[%c0_17, %c0_18] : memref<1x128xf32, #tpu.memory_space<vmem>>, vector<1x128xf32>
    tpu.vector_store %arg9[%c0_17, %c0_18], %34 {strides = array<i32>} : memref<1x128xf32, #tpu.memory_space<vmem>>, vector<1x128xf32>,
    %c0_i32_19 = arith.constant 0 : i32
    %36 = arith.cmpi eq, %arg1, %c0_i32_19 : i32
    %37 = arith.extui %36 : i1 to i32
    %c0_i32_20 = arith.constant 0 : i32
    %38 = arith.cmpi ne, %37, %c0_i32_20 : i32
    scf.if %38 {
      %c0_21 = arith.constant 0 : index
      %c0_22 = arith.constant 0 : index
      %39 = vector.load %arg8[%c0_21, %c0_22] : memref<1x128xf32, #tpu.memory_space<vmem>>, vector<1x128xf32>
      %cst_23 = arith.constant 7.812500e-03 : f32
      %40 = vector.broadcast %cst_23 : f32 to vector<1x128xf32>
      %41 = arith.mulf %39, %40 : vector<1x128xf32>
      %c0_24 = arith.constant 0 : index
      %c0_25 = arith.constant 0 : index
      %42 = vector.load %arg9[%c0_24, %c0_25] : memref<1x128xf32, #tpu.memory_space<vmem>>, vector<1x128xf32>
      %cst_26 = arith.constant 7.812500e-03 : f32
      %43 = vector.broadcast %cst_26 : f32 to vector<1x128xf32>
      %44 = arith.mulf %42, %43 : vector<1x128xf32>
      %45 = arith.mulf %41, %41 : vector<1x128xf32>
      %46 = arith.subf %44, %45 : vector<1x128xf32>
      %cst_27 = arith.constant 0.000000e+00 : f32
      %47 = vector.broadcast %cst_27 : f32 to vector<1x128xf32>
      %48 = arith.maximumf %46, %47 : vector<1x128xf32>
      %cst_28 = arith.constant 9.99999974E-6 : f32
      %49 = vector.broadcast %cst_28 : f32 to vector<1x128xf32>
      %50 = arith.addf %48, %49 : vector<1x128xf32>
      %51 = math.rsqrt %50 : vector<1x128xf32>
      %c0_29 = arith.constant 0 : index
      %c0_30 = arith.constant 0 : index
      %52 = vector.load %arg5[%c0_29, %c0_30] : memref<1x128xf32, #tpu.memory_space<vmem>>, vector<1x128xf32>
      %53 = arith.mulf %52, %51 : vector<1x128xf32>
      %c0_31 = arith.constant 0 : index
      %c0_32 = arith.constant 0 : index
      %54 = vector.load %arg6[%c0_31, %c0_32] : memref<1x128xf32, #tpu.memory_space<vmem>>, vector<1x128xf32>
      %55 = arith.addf %41, %0 : vector<1x128xf32>
      %56 = arith.mulf %55, %53 : vector<1x128xf32>
      %57 = arith.subf %54, %56 : vector<1x128xf32>
      %c0_i32_33 = arith.constant 0 : i32
      %c128_i32_34 = arith.constant 128 : i32
      %58 = arith.muli %c0_i32_33, %c128_i32_34 : i32
      %59 = tpu.assume_multiple %58, 128 : i32
      %60 = arith.index_cast %59 : i32 to index
      %c0_35 = arith.constant 0 : index
      %61 = vector.load %arg7[%60, %c0_35] : memref<128x128xf32, #tpu.memory_space<vmem>>, vector<128x128xf32>
      %62 = vector.broadcast %53 : vector<1x128xf32> to vector<128x128xf32>
      %63 = arith.mulf %61, %62 : vector<128x128xf32>
      %64 = vector.broadcast %57 : vector<1x128xf32> to vector<128x128xf32>
      %65 = arith.addf %63, %64 : vector<128x128xf32>
      %66 = arith.index_cast %59 : i32 to index
      %c0_36 = arith.constant 0 : index
      %67 = vector.load %arg7[%66, %c0_36] : memref<128x128xf32, #tpu.memory_space<vmem>>, vector<128x128xf32>
      tpu.vector_store %arg7[%66, %c0_36], %65 {strides = array<i32>} : memref<128x128xf32, #tpu.memory_space<vmem>>, vector<128x128xf32>,
      %c1_i32 = arith.constant 1 : i32
    } else {
    }
    return
  }
  func.func @transform_0(%arg0: i32, %arg1: i32) -> (i32, i32) {
    %c0_i32 = arith.constant 0 : i32
    %c0_i32_0 = arith.constant 0 : i32
    return %arg1, %c0_i32 : i32, i32
  }
  func.func @transform_1(%arg0: i32, %arg1: i32) -> (i32, i32) {
    %c0_i32 = arith.constant 0 : i32
    %c0_i32_0 = arith.constant 0 : i32
    return %c0_i32, %arg0 : i32, i32
  }
  func.func @transform_2(%arg0: i32, %arg1: i32) -> (i32, i32) {
    %c0_i32 = arith.constant 0 : i32
    %c0_i32_0 = arith.constant 0 : i32
    return %c0_i32, %arg0 : i32, i32
  }
  func.func @transform_3(%arg0: i32, %arg1: i32) -> (i32, i32) {
    %c0_i32 = arith.constant 0 : i32
    %c0_i32_0 = arith.constant 0 : i32
    return %c0_i32, %arg0 : i32, i32
  }
  func.func @transform_4(%arg0: i32, %arg1: i32) -> (i32, i32) {
    %c0_i32 = arith.constant 0 : i32
    %c0_i32_0 = arith.constant 0 : i32
    return %c0_i32, %arg0 : i32, i32
  }
  func.func @transform_5(%arg0: i32, %arg1: i32) -> (i32, i32) {
    %c0_i32 = arith.constant 0 : i32
    %c0_i32_0 = arith.constant 0 : i32
    return %c0_i32, %arg0 : i32, i32
  }
}

</mosaic_0001>

<llo_original>
// kernel: encoder_block_forward.1
$region0: #{encoder_block_forward.1}
  #allocation0 [shape = 'u32[]', space=smem, size = 0x4, offset = 0x4, fixed_abs, tag = 'smem constant byte address 0x4 - core index']
  #allocation1 [shape = 'u32[144,128]{1,0:T(1,128)}', space=vmem, size = 0x12000, scoped, tag = 'internal scratch']
  #allocation2 [shape = 'f32[1,128]{1,0:T(1,128)}', space=vmem, size = 0x200, scoped, tag = 'scratch operand']
  #allocation3 [shape = 'f32[1,128]{1,0:T(1,128)}', space=vmem, size = 0x200, scoped, tag = 'scratch operand']
  %s0 = inlined_call_operand.vmem [shape: bf16[128,128], index: 0, kind: input, shape index: {}]
  %s1 = inlined_call_operand.vmem [shape: bf16[128,128], index: 1, kind: input, shape index: {}]
  %s2 = inlined_call_operand.vmem [shape: f32[1,128], index: 2, kind: input, shape index: {}]
  %s3 = inlined_call_operand.vmem [shape: f32[1,128], index: 3, kind: input, shape index: {}]
  %s4 = inlined_call_operand.vmem [shape: f32[1,128], index: 4, kind: input, shape index: {}]
  %s5 = inlined_call_operand.vmem [shape: f32[128,128], index: 5, kind: output, shape index: {}]
  %s6 = sld [smem:[#allocation0]]
  $region38: #{encoder_block_forward.1} parent=0
    _
  %s8 = ssub.s32 1, %s6
  %s9 = scalar_select 0, %s8, %s6
  // Predicated region
  $region2: #{encoder_block_forward.1} parent=0 // pred_check
    _
  $region3: #{encoder_block_forward.1} parent=0 // pred_check_branch
    %11 = sbr.rel (0) target = $region5
  $region4: #{encoder_block_forward.1} parent=0 // pred_region
    _
  $region5: #{encoder_block_forward.1} parent=0 // pred_fallthru
    _
  // Predicated region
  $region6: #{encoder_block_forward.1} parent=0 // pred_check
    _
  $region7: #{encoder_block_forward.1} parent=0 // pred_check_branch
    %13 = sbr.rel (0) target = $region9
  $region8: #{encoder_block_forward.1} parent=0 // pred_region
    _
  $region9: #{encoder_block_forward.1} parent=0 // pred_fallthru
    _
  // Predicated region
  $region10: #{encoder_block_forward.1} parent=0 // pred_check
    _
  $region11: #{encoder_block_forward.1} parent=0 // pred_check_branch
    %15 = sbr.rel (0) target = $region13
  $region12: #{encoder_block_forward.1} parent=0 // pred_region
    _
  $region13: #{encoder_block_forward.1} parent=0 // pred_fallthru
    _
  // Predicated region
  $region14: #{encoder_block_forward.1} parent=0 // pred_check
    _
  $region15: #{encoder_block_forward.1} parent=0 // pred_check_branch
    %17 = sbr.rel (0) target = $region17
  $region16: #{encoder_block_forward.1} parent=0 // pred_region
    _
  $region17: #{encoder_block_forward.1} parent=0 // pred_fallthru
    _
  // Predicated region
  $region18: #{encoder_block_forward.1} parent=0 // pred_check
    _
  $region19: #{encoder_block_forward.1} parent=0 // pred_check_branch
    %19 = sbr.rel (0) target = $region21
  $region20: #{encoder_block_forward.1} parent=0 // pred_region
    _
  $region21: #{encoder_block_forward.1} parent=0 // pred_fallthru
    _
  %v21 = vld [vmem:[%s2] sm:$0x1]
  %v22 = vld [vmem:[%s0] sm:$0xf]
  %v23 = vld [vmem:[%s0 + $0x4] sm:$0xf]
  %v24 = vld [vmem:[%s0 + $0x8] sm:$0xf]
  %v25 = vld [vmem:[%s0 + $0xc] sm:$0xf]
  %v26 = vld [vmem:[%s0 + $0x10] sm:$0xf]
  %v27 = vld [vmem:[%s0 + $0x14] sm:$0xf]
  %v28 = vld [vmem:[%s0 + $0x18] sm:$0xf]
  %v29 = vld [vmem:[%s0 + $0x1c] sm:$0xf]
  %v30 = vld [vmem:[%s0 + $0x20] sm:$0xf]
  %v31 = vld [vmem:[%s0 + $0x24] sm:$0xf]
  %v32 = vld [vmem:[%s0 + $0x28] sm:$0xf]
  %v33 = vld [vmem:[%s0 + $0x2c] sm:$0xf]
  %v34 = vld [vmem:[%s0 + $0x30] sm:$0xf]
  %v35 = vld [vmem:[%s0 + $0x34] sm:$0xf]
  %v36 = vld [vmem:[%s0 + $0x38] sm:$0xf]
  %v37 = vld [vmem:[%s0 + $0x3c] sm:$0xf]
  %v38 = vld [vmem:[%s1] sm:$0xf]
  %v39 = vld [vmem:[%s1 + $0x4] sm:$0xf]
  %v40 = vld [vmem:[%s1 + $0x8] sm:$0xf]
  %v41 = vld [vmem:[%s1 + $0xc] sm:$0xf]
  %v42 = vld [vmem:[%s1 + $0x10] sm:$0xf]
  %v43 = vld [vmem:[%s1 + $0x14] sm:$0xf]
  %v44 = vld [vmem:[%s1 + $0x18] sm:$0xf]
  %v45 = vld [vmem:[%s1 + $0x1c] sm:$0xf]
  %v46 = vld [vmem:[%s1 + $0x20] sm:$0xf]
  %v47 = vld [vmem:[%s1 + $0x24] sm:$0xf]
  %v48 = vld [vmem:[%s1 + $0x28] sm:$0xf]
  %v49 = vld [vmem:[%s1 + $0x2c] sm:$0xf]
  %v50 = vld [vmem:[%s1 + $0x30] sm:$0xf]
  %v51 = vld [vmem:[%s1 + $0x34] sm:$0xf]
  %v52 = vld [vmem:[%s1 + $0x38] sm:$0xf]
  %v53 = vld [vmem:[%s1 + $0x3c] sm:$0xf]
  %v55 = vlaneseq
  %v56 = vshrl.u32 %v55, 7
  %v57 = vsub.s32 0, %v56
  %v58 = vrot.slane %v21, %v57
  %v76 = vunpack.c.l.b16 %v22
  %v77 = vunpack.c.l.b16 %v23
  %v78 = vunpack.c.l.b16 %v24
  %v79 = vunpack.c.l.b16 %v25
  %v80 = vunpack.c.l.b16 %v26
  %v81 = vunpack.c.l.b16 %v27
  %v82 = vunpack.c.l.b16 %v28
  %v83 = vunpack.c.l.b16 %v29
  %v84 = vunpack.c.l.b16 %v30
  %v85 = vunpack.c.l.b16 %v31
  %v86 = vunpack.c.l.b16 %v32
  %v87 = vunpack.c.l.b16 %v33
  %v88 = vunpack.c.l.b16 %v34
  %v89 = vunpack.c.l.b16 %v35
  %v90 = vunpack.c.l.b16 %v36
  %v91 = vunpack.c.l.b16 %v37
  %v92 = vpack.c.b16 %v77, %v76
  %v93 = vpack.c.b16 %v79, %v78
  %v94 = vpack.c.b16 %v81, %v80
  %v95 = vpack.c.b16 %v83, %v82
  %v96 = vpack.c.b16 %v85, %v84
  %v97 = vpack.c.b16 %v87, %v86
  %v98 = vpack.c.b16 %v89, %v88
  %v99 = vpack.c.b16 %v91, %v90
  %v124 = vunpack.c.l.b16 %v38
  %v125 = vunpack.c.l.b16 %v39
  %v126 = vunpack.c.l.b16 %v40
  %v127 = vunpack.c.l.b16 %v41
  %v128 = vunpack.c.l.b16 %v42
  %v129 = vunpack.c.l.b16 %v43
  %v130 = vunpack.c.l.b16 %v44
  %v131 = vunpack.c.l.b16 %v45
  %v132 = vunpack.c.l.b16 %v46
  %v133 = vunpack.c.l.b16 %v47
  %v134 = vunpack.c.l.b16 %v48
  %v135 = vunpack.c.l.b16 %v49
  %v136 = vunpack.c.l.b16 %v50
  %v137 = vunpack.c.l.b16 %v51
  %v138 = vunpack.c.l.b16 %v52
  %v139 = vunpack.c.l.b16 %v53
  %v140 = vpack.c.b16 %v125, %v124
  %v141 = vpack.c.b16 %v127, %v126
  %v142 = vpack.c.b16 %v129, %v128
  %v143 = vpack.c.b16 %v131, %v130
  %v144 = vpack.c.b16 %v133, %v132
  %v145 = vpack.c.b16 %v135, %v134
  %v146 = vpack.c.b16 %v137, %v136
  %v147 = vpack.c.b16 %v139, %v138
  %156 = vmatprep.subr.bf16.mxu0 0
  %157 = vmatpush1.bf16.msra.mxu0 %v147
  %158 = vmatprep.subr.bf16.mxu0 0
  %159 = vmatpush1.bf16.msra.mxu0 %v146
  %160 = vmatprep.subr.bf16.mxu0 0
  %161 = vmatpush1.bf16.msra.mxu0 %v145
  %162 = vmatprep.subr.bf16.mxu0 0
  %163 = vmatpush1.bf16.msra.mxu0 %v144
  %164 = vmatprep.subr.bf16.mxu0 0
  %165 = vmatpush1.bf16.msra.mxu0 %v143
  %166 = vmatprep.subr.bf16.mxu0 0
  %167 = vmatpush1.bf16.msra.mxu0 %v142
  %168 = vmatprep.subr.bf16.mxu0 0
  %169 = vmatpush1.bf16.msra.mxu0 %v141
  %170 = vmatprep.subr.bf16.mxu0 0
  %171 = vmatpush1.bf16.msra.mxu0 %v140
  %172 = vmatprep.subr.bf16.mxu0 0
  %173 = vmatpush2.bf16.msra.mxu0 0
  %174 = vmatprep.subr.bf16.mxu0 0
  %175 = vmatpush2.bf16.msra.mxu0 0
  %176 = vmatprep.subr.bf16.mxu0 0
  %177 = vmatpush2.bf16.msra.mxu0 0
  %178 = vmatprep.subr.bf16.mxu0 0
  %179 = vmatpush2.bf16.msra.mxu0 0
  %180 = vmatprep.subr.bf16.mxu0 0
  %181 = vmatpush2.bf16.msra.mxu0 0
  %182 = vmatprep.subr.bf16.mxu0 0
  %183 = vmatpush2.bf16.msra.mxu0 0
  %184 = vmatprep.subr.bf16.mxu0 0
  %185 = vmatpush2.bf16.msra.mxu0 0
  %186 = vmatprep.subr.bf16.mxu0 0
  %187 = vmatpush2.bf16.msra.mxu0 0
  %188 = vmatprep.mubr.bf16.mxu0 0
  %189 = vmatmul.mubr.bf16.gmra.mxu0 %v92
  %v190 = vpop.f32.mrf.mxu0
  %v191 = vadd.f32 %v58, %v190
  %v192 = vpop.f32.mrf.mxu0
  %v193 = vpop.f32.mrf.mxu0
  %v194 = vadd.f32 %v58, %v193
  %v195 = vpop.f32.mrf.mxu0
  %196 = vmatprep.mubr.bf16.mxu0 0
  %197 = vmatmul.mubr.bf16.gmra.mxu0 %v93
  %v198 = vpop.f32.mrf.mxu0
  %v199 = vadd.f32 %v58, %v198
  %v200 = vpop.f32.mrf.mxu0
  %v201 = vpop.f32.mrf.mxu0
  %v202 = vadd.f32 %v58, %v201
  %v203 = vpop.f32.mrf.mxu0
  %204 = vmatprep.mubr.bf16.mxu0 0
  %205 = vmatmul.mubr.bf16.gmra.mxu0 %v94
  %v206 = vpop.f32.mrf.mxu0
  %v207 = vadd.f32 %v58, %v206
  %v208 = vpop.f32.mrf.mxu0
  %v209 = vpop.f32.mrf.mxu0
  %v210 = vadd.f32 %v58, %v209
  %v211 = vpop.f32.mrf.mxu0
  %212 = vmatprep.mubr.bf16.mxu0 0
  %213 = vmatmul.mubr.bf16.gmra.mxu0 %v95
  %v214 = vpop.f32.mrf.mxu0
  %v215 = vadd.f32 %v58, %v214
  %v216 = vpop.f32.mrf.mxu0
  %v217 = vpop.f32.mrf.mxu0
  %v218 = vadd.f32 %v58, %v217
  %v219 = vpop.f32.mrf.mxu0
  %220 = vmatprep.mubr.bf16.mxu0 0
  %221 = vmatmul.mubr.bf16.gmra.mxu0 %v96
  %v222 = vpop.f32.mrf.mxu0
  %v223 = vadd.f32 %v58, %v222
  %v224 = vpop.f32.mrf.mxu0
  %v225 = vpop.f32.mrf.mxu0
  %v226 = vadd.f32 %v58, %v225
  %v227 = vpop.f32.mrf.mxu0
  %228 = vmatprep.mubr.bf16.mxu0 0
  %229 = vmatmul.mubr.bf16.gmra.mxu0 %v97
  %v230 = vpop.f32.mrf.mxu0
  %v231 = vadd.f32 %v58, %v230
  %v232 = vpop.f32.mrf.mxu0
  %v233 = vpop.f32.mrf.mxu0
  %v234 = vadd.f32 %v58, %v233
  %v235 = vpop.f32.mrf.mxu0
  %236 = vmatprep.mubr.bf16.mxu0 0
  %237 = vmatmul.mubr.bf16.gmra.mxu0 %v98
  %v238 = vpop.f32.mrf.mxu0
  %v239 = vadd.f32 %v58, %v238
  %v240 = vpop.f32.mrf.mxu0
  %v241 = vpop.f32.mrf.mxu0
  %v242 = vadd.f32 %v58, %v241
  %v243 = vpop.f32.mrf.mxu0
  %244 = vmatprep.mubr.bf16.mxu0 0
  %245 = vmatmul.mubr.bf16.gmra.mxu0 %v99
  %v246 = vpop.f32.mrf.mxu0
  %v247 = vadd.f32 %v58, %v246
  %v248 = vpop.f32.mrf.mxu0
  %v249 = vpop.f32.mrf.mxu0
  %v250 = vadd.f32 %v58, %v249
  %v251 = vpop.f32.mrf.mxu0
  %252 = vdwg.mxu0
  %s253 = smul.u32 0, 128
  %s254 = scalar_lea.vmem %s5, %s253
  %255 = vst [vmem:[%s254] sm:$0xff] %v191
  %256 = vst [vmem:[%s254 + $0x8] sm:$0xff] %v194
  %257 = vst [vmem:[%s254 + $0x10] sm:$0xff] %v199
  %258 = vst [vmem:[%s254 + $0x18] sm:$0xff] %v202
  %259 = vst [vmem:[%s254 + $0x20] sm:$0xff] %v207
  %260 = vst [vmem:[%s254 + $0x28] sm:$0xff] %v210
  %261 = vst [vmem:[%s254 + $0x30] sm:$0xff] %v215
  %262 = vst [vmem:[%s254 + $0x38] sm:$0xff] %v218
  %263 = vst [vmem:[%s254 + $0x40] sm:$0xff] %v223
  %264 = vst [vmem:[%s254 + $0x48] sm:$0xff] %v226
  %265 = vst [vmem:[%s254 + $0x50] sm:$0xff] %v231
  %266 = vst [vmem:[%s254 + $0x58] sm:$0xff] %v234
  %267 = vst [vmem:[%s254 + $0x60] sm:$0xff] %v239
  %268 = vst [vmem:[%s254 + $0x68] sm:$0xff] %v242
  %269 = vst [vmem:[%s254 + $0x70] sm:$0xff] %v247
  %270 = vst [vmem:[%s254 + $0x78] sm:$0xff] %v250
  %v271 = vlaneseq
  %v272 = vshrl.u32 %v271, 7
  %v273 = vadd.s32 %v272, 8
  %v274 = vadd.s32 %v272, 16
  %v275 = vadd.s32 %v272, 24
  %v276 = vadd.s32 %v272, 32
  %v277 = vadd.s32 %v272, 40
  %v278 = vadd.s32 %v272, 48
  %v279 = vadd.s32 %v272, 56
  %v280 = vadd.s32 %v272, 64
  %v281 = vadd.s32 %v272, 72
  %v282 = vadd.s32 %v272, 80
  %v283 = vadd.s32 %v272, 88
  %v284 = vadd.s32 %v272, 96
  %v285 = vadd.s32 %v272, 104
  %v286 = vadd.s32 %v272, 112
  %v287 = vadd.s32 %v272, 120
  %v288 = vstv %s253
  %v289 = vadd.s32 %v288, %v272
  %v290 = vadd.s32 %v288, %v273
  %v291 = vadd.s32 %v288, %v274
  %v292 = vadd.s32 %v288, %v275
  %v293 = vadd.s32 %v288, %v276
  %v294 = vadd.s32 %v288, %v277
  %v295 = vadd.s32 %v288, %v278
  %v296 = vadd.s32 %v288, %v279
  %v297 = vadd.s32 %v288, %v280
  %v298 = vadd.s32 %v288, %v281
  %v299 = vadd.s32 %v288, %v282
  %v300 = vadd.s32 %v288, %v283
  %v301 = vadd.s32 %v288, %v284
  %v302 = vadd.s32 %v288, %v285
  %v303 = vadd.s32 %v288, %v286
  %v304 = vadd.s32 %v288, %v287
  %vm305 = vcmp.lt.s32.totalorder %v289, 128
  %vm306 = vcmp.lt.s32.totalorder %v290, 128
  %vm307 = vcmp.lt.s32.totalorder %v291, 128
  %vm308 = vcmp.lt.s32.totalorder %v292, 128
  %vm309 = vcmp.lt.s32.totalorder %v293, 128
  %vm310 = vcmp.lt.s32.totalorder %v294, 128
  %vm311 = vcmp.lt.s32.totalorder %v295, 128
  %vm312 = vcmp.lt.s32.totalorder %v296, 128
  %vm313 = vcmp.lt.s32.totalorder %v297, 128
  %vm314 = vcmp.lt.s32.totalorder %v298, 128
  %vm315 = vcmp.lt.s32.totalorder %v299, 128
  %vm316 = vcmp.lt.s32.totalorder %v300, 128
  %vm317 = vcmp.lt.s32.totalorder %v301, 128
  %vm318 = vcmp.lt.s32.totalorder %v302, 128
  %vm319 = vcmp.lt.s32.totalorder %v303, 128
  %vm320 = vcmp.lt.s32.totalorder %v304, 128
  %v321 = vsel %vm305, 1, 0
  %v322 = vsel %vm306, 1, 0
  %v323 = vsel %vm307, 1, 0
  %v324 = vsel %vm308, 1, 0
  %v325 = vsel %vm309, 1, 0
  %v326 = vsel %vm310, 1, 0
  %v327 = vsel %vm311, 1, 0
  %v328 = vsel %vm312, 1, 0
  %v329 = vsel %vm313, 1, 0
  %v330 = vsel %vm314, 1, 0
  %v331 = vsel %vm315, 1, 0
  %v332 = vsel %vm316, 1, 0
  %v333 = vsel %vm317, 1, 0
  %v334 = vsel %vm318, 1, 0
  %v335 = vsel %vm319, 1, 0
  %v336 = vsel %vm320, 1, 0
  %v337 = vcvt.s32.f32 %v321
  %v338 = vcvt.s32.f32 %v322
  %v339 = vcvt.s32.f32 %v323
  %v340 = vcvt.s32.f32 %v324
  %v341 = vcvt.s32.f32 %v325
  %v342 = vcvt.s32.f32 %v326
  %v343 = vcvt.s32.f32 %v327
  %v344 = vcvt.s32.f32 %v328
  %v345 = vcvt.s32.f32 %v329
  %v346 = vcvt.s32.f32 %v330
  %v347 = vcvt.s32.f32 %v331
  %v348 = vcvt.s32.f32 %v332
  %v349 = vcvt.s32.f32 %v333
  %v350 = vcvt.s32.f32 %v334
  %v351 = vcvt.s32.f32 %v335
  %v352 = vcvt.s32.f32 %v336
  %v353 = vsub.f32 %v191, %v58
  %v354 = vsub.f32 %v194, %v58
  %v355 = vsub.f32 %v199, %v58
  %v356 = vsub.f32 %v202, %v58
  %v357 = vsub.f32 %v207, %v58
  %v358 = vsub.f32 %v210, %v58
  %v359 = vsub.f32 %v215, %v58
  %v360 = vsub.f32 %v218, %v58
  %v361 = vsub.f32 %v223, %v58
  %v362 = vsub.f32 %v226, %v58
  %v363 = vsub.f32 %v231, %v58
  %v364 = vsub.f32 %v234, %v58
  %v365 = vsub.f32 %v239, %v58
  %v366 = vsub.f32 %v242, %v58
  %v367 = vsub.f32 %v247, %v58
  %v368 = vsub.f32 %v250, %v58
  %v369 = vmul.f32 %v353, %v337
  %v370 = vmul.f32 %v354, %v338
  %v371 = vmul.f32 %v355, %v339
  %v372 = vmul.f32 %v356, %v340
  %v373 = vmul.f32 %v357, %v341
  %v374 = vmul.f32 %v358, %v342
  %v375 = vmul.f32 %v359, %v343
  %v376 = vmul.f32 %v360, %v344
  %v377 = vmul.f32 %v361, %v345
  %v378 = vmul.f32 %v362, %v346
  %v379 = vmul.f32 %v363, %v347
  %v380 = vmul.f32 %v364, %v348
  %v381 = vmul.f32 %v365, %v349
  %v382 = vmul.f32 %v366, %v350
  %v383 = vmul.f32 %v367, %v351
  %v384 = vmul.f32 %v368, %v352
  %p385 = scmp.eq.s32.totalorder 0, 0
  // Predicated region
  $region22: #{encoder_block_forward.1} parent=0 // pred_check
    %p386 = pneg %p385
  $region23: #{encoder_block_forward.1} parent=0 // pred_check_branch
    %388 = sbr.rel (%p386) target = $region25
  $region24: #{encoder_block_forward.1} parent=0 // pred_region
    %389 = vst [vmem:[#allocation2] sm:$0x1] 0.0
    %390 = vst [vmem:[#allocation3] sm:$0x1] 0.0
  $region25: #{encoder_block_forward.1} parent=0 // pred_fallthru
    _
  %v391 = vld [vmem:[#allocation2] sm:$0x1]
  %v392 = vadd.f32 %v369, %v370
  %v393 = vadd.f32 %v392, %v371
  %v394 = vadd.f32 %v393, %v372
  %v395 = vadd.f32 %v394, %v373
  %v396 = vadd.f32 %v395, %v374
  %v397 = vadd.f32 %v396, %v375
  %v398 = vadd.f32 %v397, %v376
  %v399 = vadd.f32 %v398, %v377
  %v400 = vadd.f32 %v399, %v378
  %v401 = vadd.f32 %v400, %v379
  %v402 = vadd.f32 %v401, %v380
  %v403 = vadd.f32 %v402, %v381
  %v404 = vadd.f32 %v403, %v382
  %v405 = vadd.f32 %v404, %v383
  %v406 = vadd.f32 %v405, %v384
  %v407 = vrot.slane %v406, 4
  %v408 = vadd.f32 %v406, %v407
  %v409 = vrot.slane %v408, 2
  %v410 = vadd.f32 %v408, %v409
  %v411 = vrot.slane %v410, 1
  %v412 = vadd.f32 %v410, %v411
  %v413 = vadd.f32 %v391, %v412
  %414 = vst [vmem:[#allocation2] sm:$0x1] %v413
  %v415 = vld [vmem:[#allocation3] sm:$0x1]
  %v416 = vmul.f32 %v369, %v369
  %v417 = vmul.f32 %v370, %v370
  %v418 = vmul.f32 %v371, %v371
  %v419 = vmul.f32 %v372, %v372
  %v420 = vmul.f32 %v373, %v373
  %v421 = vmul.f32 %v374, %v374
  %v422 = vmul.f32 %v375, %v375
  %v423 = vmul.f32 %v376, %v376
  %v424 = vmul.f32 %v377, %v377
  %v425 = vmul.f32 %v378, %v378
  %v426 = vmul.f32 %v379, %v379
  %v427 = vmul.f32 %v380, %v380
  %v428 = vmul.f32 %v381, %v381
  %v429 = vmul.f32 %v382, %v382
  %v430 = vmul.f32 %v383, %v383
  %v431 = vmul.f32 %v384, %v384
  %v432 = vadd.f32 %v416, %v417
  %v433 = vadd.f32 %v432, %v418
  %v434 = vadd.f32 %v433, %v419
  %v435 = vadd.f32 %v434, %v420
  %v436 = vadd.f32 %v435, %v421
  %v437 = vadd.f32 %v436, %v422
  %v438 = vadd.f32 %v437, %v423
  %v439 = vadd.f32 %v438, %v424
  %v440 = vadd.f32 %v439, %v425
  %v441 = vadd.f32 %v440, %v426
  %v442 = vadd.f32 %v441, %v427
  %v443 = vadd.f32 %v442, %v428
  %v444 = vadd.f32 %v443, %v429
  %v445 = vadd.f32 %v444, %v430
  %v446 = vadd.f32 %v445, %v431
  %v447 = vrot.slane %v446, 4
  %v448 = vadd.f32 %v446, %v447
  %v449 = vrot.slane %v448, 2
  %v450 = vadd.f32 %v448, %v449
  %v451 = vrot.slane %v450, 1
  %v452 = vadd.f32 %v450, %v451
  %v453 = vadd.f32 %v415, %v452
  %454 = vst [vmem:[#allocation3] sm:$0x1] %v453
  // Predicated region
  $region26: #{encoder_block_forward.1} parent=0 // pred_check
    %p455 = pneg %p385
  $region27: #{encoder_block_forward.1} parent=0 // pred_check_branch
    %457 = sbr.rel (%p455) target = $region29
  $region28: #{encoder_block_forward.1} parent=0 // pred_region
    %v458 = vld [vmem:[#allocation2] sm:$0x1]
    %v459 = vmul.f32 %v458, 0.0078125
    %v460 = vld [vmem:[#allocation3] sm:$0x1]
    %v461 = vmul.f32 %v460, 0.0078125
    %v462 = vmul.f32 %v459, %v459
    %v463 = vsub.f32 %v461, %v462
    %v464 = vmax.f32 %v463, 0.0
    %v465 = vadd.f32 %v464, 1e-05
    %v466 = vrsqrt.pop %v465
    %v467 = vld [vmem:[%s3] sm:$0x1]
    %v468 = vmul.f32 %v467, %v466
    %v469 = vld [vmem:[%s4] sm:$0x1]
    %v470 = vadd.f32 %v459, %v21
    %v471 = vmul.f32 %v470, %v468
    %v472 = vsub.f32 %v469, %v471
    %v473 = vld [vmem:[%s5] sm:$0xff]
    %v474 = vld [vmem:[%s5 + $0x8] sm:$0xff]
    %v475 = vld [vmem:[%s5 + $0x10] sm:$0xff]
    %v476 = vld [vmem:[%s5 + $0x18] sm:$0xff]
    %v477 = vld [vmem:[%s5 + $0x20] sm:$0xff]
    %v478 = vld [vmem:[%s5 + $0x28] sm:$0xff]
    %v479 = vld [vmem:[%s5 + $0x30] sm:$0xff]
    %v480 = vld [vmem:[%s5 + $0x38] sm:$0xff]
    %v481 = vld [vmem:[%s5 + $0x40] sm:$0xff]
    %v482 = vld [vmem:[%s5 + $0x48] sm:$0xff]
    %v483 = vld [vmem:[%s5 + $0x50] sm:$0xff]
    %v484 = vld [vmem:[%s5 + $0x58] sm:$0xff]
    %v485 = vld [vmem:[%s5 + $0x60] sm:$0xff]
    %v486 = vld [vmem:[%s5 + $0x68] sm:$0xff]
    %v487 = vld [vmem:[%s5 + $0x70] sm:$0xff]
    %v488 = vld [vmem:[%s5 + $0x78] sm:$0xff]
    %v490 = vlaneseq
    %v491 = vshrl.u32 %v490, 7
    %v492 = vsub.s32 0, %v491
    %v493 = vrot.slane %v468, %v492
    %v495 = vmul.f32 %v473, %v493
    %v496 = vmul.f32 %v474, %v493
    %v497 = vmul.f32 %v475, %v493
    %v498 = vmul.f32 %v476, %v493
    %v499 = vmul.f32 %v477, %v493
    %v500 = vmul.f32 %v478, %v493
    %v501 = vmul.f32 %v479, %v493
    %v502 = vmul.f32 %v480, %v493
    %v503 = vmul.f32 %v481, %v493
    %v504 = vmul.f32 %v482, %v493
    %v505 = vmul.f32 %v483, %v493
    %v506 = vmul.f32 %v484, %v493
    %v507 = vmul.f32 %v485, %v493
    %v508 = vmul.f32 %v486, %v493
    %v509 = vmul.f32 %v487, %v493
    %v510 = vmul.f32 %v488, %v493
    %v512 = vlaneseq
    %v513 = vshrl.u32 %v512, 7
    %v514 = vsub.s32 0, %v513
    %v515 = vrot.slane %v472, %v514
    %v517 = vadd.f32 %v495, %v515
    %v518 = vadd.f32 %v496, %v515
    %v519 = vadd.f32 %v497, %v515
    %v520 = vadd.f32 %v498, %v515
    %v521 = vadd.f32 %v499, %v515
    %v522 = vadd.f32 %v500, %v515
    %v523 = vadd.f32 %v501, %v515
    %v524 = vadd.f32 %v502, %v515
    %v525 = vadd.f32 %v503, %v515
    %v526 = vadd.f32 %v504, %v515
    %v527 = vadd.f32 %v505, %v515
    %v528 = vadd.f32 %v506, %v515
    %v529 = vadd.f32 %v507, %v515
    %v530 = vadd.f32 %v508, %v515
    %v531 = vadd.f32 %v509, %v515
    %v532 = vadd.f32 %v510, %v515
    %533 = vst [vmem:[%s5] sm:$0xff] %v517
    %534 = vst [vmem:[%s5 + $0x8] sm:$0xff] %v518
    %535 = vst [vmem:[%s5 + $0x10] sm:$0xff] %v519
    %536 = vst [vmem:[%s5 + $0x18] sm:$0xff] %v520
    %537 = vst [vmem:[%s5 + $0x20] sm:$0xff] %v521
    %538 = vst [vmem:[%s5 + $0x28] sm:$0xff] %v522
    %539 = vst [vmem:[%s5 + $0x30] sm:$0xff] %v523
    %540 = vst [vmem:[%s5 + $0x38] sm:$0xff] %v524
    %541 = vst [vmem:[%s5 + $0x40] sm:$0xff] %v525
    %542 = vst [vmem:[%s5 + $0x48] sm:$0xff] %v526
    %543 = vst [vmem:[%s5 + $0x50] sm:$0xff] %v527
    %544 = vst [vmem:[%s5 + $0x58] sm:$0xff] %v528
    %545 = vst [vmem:[%s5 + $0x60] sm:$0xff] %v529
    %546 = vst [vmem:[%s5 + $0x68] sm:$0xff] %v530
    %547 = vst [vmem:[%s5 + $0x70] sm:$0xff] %v531
    %548 = vst [vmem:[%s5 + $0x78] sm:$0xff] %v532
  $region29: #{encoder_block_forward.1} parent=0 // pred_fallthru
    _
  // Predicated region
  $region30: #{encoder_block_forward.1} parent=0 // pred_check
    _
  $region31: #{encoder_block_forward.1} parent=0 // pred_check_branch
    %550 = sbr.rel (0) target = $region33
  $region32: #{encoder_block_forward.1} parent=0 // pred_region
    _
  $region33: #{encoder_block_forward.1} parent=0 // pred_fallthru
    _
  // Predicated region
  $region34: #{encoder_block_forward.1} parent=0 // pred_check
    _
  $region35: #{encoder_block_forward.1} parent=0 // pred_check_branch
    %552 = sbr.rel (0) target = $region37
  $region36: #{encoder_block_forward.1} parent=0 // pred_region
    _
  $region37: #{encoder_block_forward.1} parent=0 // pred_fallthru
    _

</llo_original>
